<compile_context>
chip_gen: v6e
topology: v6e:2x2x1
jax: 0.10.0
libtpu: 0.0.40
codegen_flags: <defaults>
</compile_context>

<pallas_src>
import functools

import numpy as np

import jax
import jax.numpy as jnp
from jax.experimental import pallas as pl
from jax.experimental.pallas import tpu as pltpu


# ---------------------------------------------------------------------------
# Kernels
# ---------------------------------------------------------------------------

def _pad_width_kernel(x_ref, o_ref, *, fill, pad):
    """h > w: pad the last (lane) dim.  x:(1,Th,w) -> o:(1,Th,w+2*pad).

    Build the full output row tile with a concat and do ONE dense full-width
    store instead of a lane-misaligned interior store plus two masked strips.
    """
    th = x_ref.shape[1]
    strip = jnp.full((1, th, pad), fill, dtype=o_ref.dtype)
    o_ref[...] = jnp.concatenate([strip, x_ref[...], strip], axis=-1)
    # TODO(synk): a manual-DMA variant (out memory_space=pl.ANY +
    # pltpu.make_async_copy into the interior byte offset) would skip the vreg
    # store path entirely; concat-then-single-dense-store is the cheap version.


def _pad_height_kernel(x_ref, o_ref, *, fill, pad):
    """h < w: pad the row (sublane) dim.  x:(1,h,Tw) -> o:(1,h+2*pad,Tw).

    Stores are lane-dense; write-once (strips + interior, nothing overwritten).
    """
    h, tw = x_ref.shape[1], x_ref.shape[2]
    strip = jnp.full((1, pad, tw), fill, dtype=o_ref.dtype)
    o_ref[:, :pad, :] = strip                 # top strip
    o_ref[:, pad:pad + h, :] = x_ref[...]     # interior, written exactly once
    o_ref[:, pad + h:, :] = strip             # bottom strip


# ---------------------------------------------------------------------------
# Helpers
# ---------------------------------------------------------------------------

_SMALL_IMAGE_ELEMS = 16384   # below this, XLA's native pad beats kernel launch
_LANE = 128


def _round_down(x, m):
    return (x // m) * m


def _sublane_align(dtype):
    # Packed sublane tile: 8 (32-bit), 16 (16-bit), 32 (8-bit).  All kernel
    # invocations here see 32-bit data, so this is effectively always 8.
    itemsize = jnp.dtype(dtype).itemsize
    return 8 * max(1, 4 // itemsize)


def _vmem_capacity_bytes():
    try:
        info = pltpu.get_tpu_info()
        for attr in ("vmem_capacity_bytes", "vmem_size_bytes"):
            cap = getattr(info, attr, None)
            if cap:
                return int(cap)
    except Exception:
        pass
    return 128 << 20


def _block_spec(shape, index_map, buffers):
    if buffers and buffers != 2:
        return pl.BlockSpec(shape, index_map, pipeline_mode=pl.Buffered(buffers))
    return pl.BlockSpec(shape, index_map)


def _xla_pad(image, pad, pad_last, fill):
    if pad_last:
        return jnp.pad(image, ((0, 0), (0, 0), (pad, pad)), constant_values=fill)
    return jnp.pad(image, ((0, 0), (pad, pad), (0, 0)), constant_values=fill)


def _pad_call(x, fill, pad, pad_last, tile, buffers):
    """pallas_call on a (c, h, w) array (always 32-bit dtype here)."""
    c, h, w = x.shape
    dtype = x.dtype
    itemsize = jnp.dtype(dtype).itemsize

    # Generation-aware budgets: v7x has 64 MiB VMEM/TC -> smaller blocks;
    # v5e/v6e have 128 MiB -> bigger blocks to amortize ~0.35us/step overhead.
    vmem_cap = _vmem_capacity_bytes()
    small_vmem = vmem_cap < (96 << 20)
    block_budget = (6 << 20) if small_vmem else (12 << 20)        # in+out per block
    full_plane_budget = (16 << 20) if small_vmem else (32 << 20)  # in+out per plane

    if pad_last:
        # Pad width; tile over rows (the unpadded axis) -> blocks are fully
        # contiguous in HBM for both input and output.
        w_out = w + 2 * pad
        align = _sublane_align(dtype)
        row_bytes = (w + w_out) * itemsize
        tile_h = tile if tile is not None else max(1, block_budget // row_bytes)
        tile_h = max(align, _round_down(int(tile_h), align))
        if tile_h >= h:
            tile_h = h
        grid = (pl.cdiv(h, tile_h), c)        # tile axis leads: balanced on v7x
        in_spec = _block_spec((1, tile_h, w), lambda ti, ci: (ci, ti, 0), buffers)
        out_spec = _block_spec((1, tile_h, w_out), lambda ti, ci: (ci, ti, 0), buffers)
        out_shape = jax.ShapeDtypeStruct((c, h, w_out), dtype)
        kernel = functools.partial(_pad_width_kernel, fill=fill, pad=pad)
        block_bytes = tile_h * (w + w_out) * itemsize
        semantics = ("parallel", "parallel")
    else:
        # Pad height.  Prefer one fully-contiguous full-plane block per
        # channel; fall back to wide 128-aligned column tiles (strided DMA).
        h_out = h + 2 * pad
        plane_bytes = (h + h_out) * w * itemsize
        if tile is None and plane_bytes <= full_plane_budget:
            grid = (c,)
            in_spec = _block_spec((1, h, w), lambda ci: (ci, 0, 0), buffers)
            out_spec = _block_spec((1, h_out, w), lambda ci: (ci, 0, 0), buffers)
            block_bytes = plane_bytes
            semantics = ("parallel",)
        else:
            col_bytes = (h + h_out) * itemsize
            tile_w = tile if tile is not None else max(1, block_budget // col_bytes)
            tile_w = max(_LANE, _round_down(int(tile_w), _LANE))
            if tile_w >= w:
                tile_w = w
            grid = (pl.cdiv(w, tile_w), c)
            in_spec = _block_spec((1, h, tile_w), lambda ti, ci: (ci, 0, ti), buffers)
            out_spec = _block_spec((1, h_out, tile_w), lambda ti, ci: (ci, 0, ti), buffers)
            block_bytes = (h + h_out) * tile_w * itemsize
            semantics = ("parallel", "parallel")
        out_shape = jax.ShapeDtypeStruct((c, h_out, w), dtype)
        kernel = functools.partial(_pad_height_kernel, fill=fill, pad=pad)

    # VMEM limit from the actual buffer count + headroom, per-generation cap.
    n_buf = max(2, buffers)
    vmem_limit = int(min(max(n_buf * block_bytes + (4 << 20), 8 << 20),
                         min(vmem_cap, 128 << 20)))

    return pl.pallas_call(
        kernel,
        out_shape=out_shape,
        grid=grid,
        in_specs=[in_spec],
        out_specs=out_spec,
        compiler_params=pltpu.CompilerParams(
            dimension_semantics=semantics,
            vmem_limit_bytes=vmem_limit,
        ),
    )(x)


# ---------------------------------------------------------------------------
# Public wrapper (matches PadToSquare.forward)
# ---------------------------------------------------------------------------

def pad_to_square(image, fill=0, padding_mode="constant", *, tile=None, buffers=2):
    """JAX/Pallas equivalent of PadToSquare.forward for a (C, H, W) image.

    `buffers` > 2 requests deeper pipelining (pl.Buffered); sweep if desired.
    """
    # TODO(synk): only 'constant' padding_mode (the module default) is
    # implemented; 'reflect'/'replicate' have no clean single-store form here.
    assert padding_mode == "constant", "only constant padding supported"

    c, h, w = image.shape
    if h == w:
        return image
    pad = abs(h - w) // 2
    if pad == 0:                      # |h - w| == 1 -> zero padding is a no-op
        return image

    pad_last = h > w
    dtype = image.dtype
    itemsize = jnp.dtype(dtype).itemsize

    # Tiny images: per-grid-step + custom-call overhead dominates.
    if h * w <= _SMALL_IMAGE_ELEMS:
        return _xla_pad(image, pad, pad_last, fill)

    if itemsize >= 4:
        return _pad_call(image, fill, pad, pad_last, tile, buffers)

    # Packed dtypes (uint8/int8/bf16/...): reinterpret r = 4/itemsize lane
    # elements as one uint32 word (free bitcast/reshape outside the kernel) so
    # all in-kernel loads/stores are 32-bit: dense (8,128) tiles, no packed
    # relayout, no sub-word masked stores.
    r = 4 // itemsize
    if (w % r != 0) or (pad_last and pad % r != 0):
        # TODO(synk): rare non-word-divisible packed case; defer to XLA's pad.
        return _xla_pad(image, pad, pad_last, fill)

    elt = np.asarray(fill, dtype=np.dtype(dtype))
    word = int(np.frombuffer(elt.tobytes() * r, dtype=np.uint32)[0])
    x32 = jax.lax.bitcast_convert_type(image.reshape(c, h, w // r, r), jnp.uint32)

    if tile is not None and not pad_last:
        tile32 = max(_LANE, tile // r)        # column tiles are in elements
    else:
        tile32 = tile                         # row tiles are unaffected
    pad32 = pad // r if pad_last else pad

    out32 = _pad_call(x32, word, pad32, pad_last, tile32, buffers)
    oc, oh, ow32 = out32.shape
    return jax.lax.bitcast_convert_type(out32, dtype).reshape(oc, oh, ow32 * r)


# ---------------------------------------------------------------------------
# Self-test
# ---------------------------------------------------------------------------

if __name__ == "__main__":
    key = jax.random.PRNGKey(0)
    k1, k2, k3, k4, k5 = jax.random.split(key, 5)

    # 1) h > w, f32, forced row tiling (grid = (4, 3)), unaligned lane offset.
    img = jax.random.normal(k1, (3, 256, 128), dtype=jnp.float32)
    out = jax.block_until_ready(pad_to_square(img, tile=64))
    p = (256 - 128) // 2
    ref = jnp.pad(img, ((0, 0), (0, 0), (p, p)))
    assert out.shape == (3, 256, 256), out.shape
    assert jnp.array_equal(out, ref), "f32 width-pad mismatch"

    # 2) h > w, uint8 (packed -> u32 bitcast path), partial last row tile
    #    (200 % 64 != 0), nonzero fill.
    img = jax.random.randint(k2, (3, 200, 128), 0, 256,
                             dtype=jnp.int32).astype(jnp.uint8)
    out = jax.block_until_ready(pad_to_square(img, fill=3, tile=64))
    p = (200 - 128) // 2
    ref = jnp.pad(img, ((0, 0), (0, 0), (p, p)), constant_values=3)
    assert out.dtype == jnp.uint8 and out.shape == (3, 200, 200)
    assert jnp.array_equal(out, ref), "uint8 width-pad mismatch"

    # 3) h < w, f32, full-plane contiguous blocks (grid = (3,)).
    img = jax.random.normal(k3, (3, 128, 256), dtype=jnp.float32)
    out = jax.block_until_ready(pad_to_square(img))
    p = (256 - 128) // 2
    ref = jnp.pad(img, ((0, 0), (p, p), (0, 0)))
    assert out.shape == (3, 256, 256)
    assert jnp.array_equal(out, ref), "f32 height-pad (full-plane) mismatch"

    # 4) h < w, f32, forced column tiling (grid = (4, 3)).
    img = jax.random.normal(k4, (3, 128, 512), dtype=jnp.float32)
    out = jax.block_until_ready(pad_to_square(img, tile=128))
    p = (512 - 128) // 2
    ref = jnp.pad(img, ((0, 0), (p, p), (0, 0)))
    assert out.shape == (3, 512, 512)
    assert jnp.array_equal(out, ref), "f32 height-pad (column-tiled) mismatch"

    # 5) h < w, uint8 kept uint8 end-to-end, nonzero fill, default tiling.
    img = jax.random.randint(k5, (3, 128, 256), 0, 256,
                             dtype=jnp.int32).astype(jnp.uint8)
    out = jax.block_until_ready(pad_to_square(img, fill=7))
    p = (256 - 128) // 2
    ref = jnp.pad(img, ((0, 0), (p, p), (0, 0)), constant_values=7)
    assert out.dtype == jnp.uint8
    assert jnp.array_equal(out, ref), "uint8 height-pad mismatch"

    # 6) Square input returned unchanged; tiny image fast path; odd |h-w|.
    sq = jax.random.normal(k1, (3, 64, 64), dtype=jnp.float32)
    assert jnp.array_equal(jax.block_until_ready(pad_to_square(sq)), sq)

    tiny = jax.random.normal(k2, (3, 16, 8), dtype=jnp.float32)
    out_tiny = jax.block_until_ready(pad_to_square(tiny))
    assert out_tiny.shape == (3, 16, 16)
    assert jnp.array_equal(out_tiny, jnp.pad(tiny, ((0, 0), (0, 0), (4, 4))))

    odd = jax.random.normal(k3, (3, 19, 16), dtype=jnp.float32)  # |h-w|=3 -> pad=1
    out_odd = jax.block_until_ready(pad_to_square(odd))
    assert out_odd.shape == (3, 19, 18)
    assert jnp.array_equal(out_odd, jnp.pad(odd, ((0, 0), (0, 0), (1, 1))))

    print("KERNEL_OK")
</pallas_src>

<mosaic_0001>
module attributes {stable_mosaic.version = 11 : i64} {
  func.func @_pad_width_kernel(%arg0: i32, %arg1: i32, %arg2: memref<1x64x128xf32, #tpu.memory_space<vmem>>, %arg3: memref<1x64x256xf32, #tpu.memory_space<vmem>>) attributes {dimension_semantics = [#tpu.dimension_semantics<parallel>, #tpu.dimension_semantics<parallel>], iteration_bounds = array<i64: 4, 3>, scalar_prefetch = 0 : i64, scratch_operands = 0 : i64, tpu.core_type = #tpu.core_type<tc>, window_params = [{transform_indices = @transform_0, window_bounds = array<i64: 1, 64, 128>}, {transform_indices = @transform_1, window_bounds = array<i64: 1, 64, 256>}]} {
    %cst = arith.constant 0.000000e+00 : f32
    %0 = vector.broadcast %cst : f32 to vector<1x64x64xf32>
    %c0 = arith.constant 0 : index
    %c0_0 = arith.constant 0 : index
    %c0_1 = arith.constant 0 : index
    %1 = vector.load %arg2[%c0, %c0_0, %c0_1] : memref<1x64x128xf32, #tpu.memory_space<vmem>>, vector<1x64x128xf32>
    %2 = tpu.concatenate %0, %1, %0 in 2 : vector<1x64x64xf32>, vector<1x64x128xf32>, vector<1x64x64xf32> -> vector<1x64x256xf32>
    %c0_2 = arith.constant 0 : index
    %c0_3 = arith.constant 0 : index
    %c0_4 = arith.constant 0 : index
    %3 = vector.load %arg3[%c0_2, %c0_3, %c0_4] : memref<1x64x256xf32, #tpu.memory_space<vmem>>, vector<1x64x256xf32>
    tpu.vector_store %arg3[%c0_2, %c0_3, %c0_4], %2 {strides = array<i32>} : memref<1x64x256xf32, #tpu.memory_space<vmem>>, vector<1x64x256xf32>,
    return
  }
  func.func @transform_0(%arg0: i32, %arg1: i32) -> (i32, i32, i32) {
    %c0_i32 = arith.constant 0 : i32
    %c0_i32_0 = arith.constant 0 : i32
    return %arg1, %arg0, %c0_i32 : i32, i32, i32
  }
  func.func @transform_1(%arg0: i32, %arg1: i32) -> (i32, i32, i32) {
    %c0_i32 = arith.constant 0 : i32
    %c0_i32_0 = arith.constant 0 : i32
    return %arg1, %arg0, %c0_i32 : i32, i32, i32
  }
}

</mosaic_0001>

<llo_original>
// kernel: tpu_custom_call.1
$region0: #{tpu_custom_call.1}
  #allocation0 [shape = 'u32[]', space=smem, size = 0x4, offset = 0x4, fixed_abs, tag = 'smem constant byte address 0x4 - core index']
  #allocation1 [shape = 'u32[144,128]{1,0:T(1,128)}', space=vmem, size = 0x12000, scoped, tag = 'internal scratch']
  %s0 = inlined_call_operand.hbm [shape: f32[3,256,128], index: 0, kind: input, shape index: {}]
  %s1 = inlined_call_operand.hbm [shape: f32[3,256,256], index: 1, kind: output, shape index: {}]
  %s2 = sld [smem:[#allocation0]]
  $region41: #{tpu_custom_call.1} parent=0
    _
  %s4 = ssub.s32 1, %s2
  %s5 = scalar_select 0, %s4, %s2
  $region1: #{tpu_custom_call.1} parent=0
    #allocation2 [shape = 'u8[65536]{0}', space=vmem, size = 0x10000, scoped, tag = 'input window, operand 0']
    #allocation3 [shape = 's32[2]{0}', space=sflag, size = 0x8, scoped, tag = 'scoped memory for tpu_custom_call.1']
    #allocation4 [shape = 's32[2]{0}', space=sflag, size = 0x8, scoped, tag = 'scoped memory for tpu_custom_call.1']
    #allocation5 [shape = 'u8[131072]{0}', space=vmem, size = 0x20000, scoped, tag = 'output window, operand 0']
    %6 = vsyncpa [#allocation3], 0
    %s7 = scalar_lea.sflag [#allocation3], 1
    %8 = vsyncpa %s7, 0
    %9 = vsyncpa [#allocation4], 0
    %s10 = scalar_lea.sflag [#allocation4], 1
    %11 = vsyncpa %s10, 0
    loop: start=0, step=1, limit=14
    $region2: #{tpu_custom_call.1} parent=1 // loop_pre_header
      _
    $region3: #{tpu_custom_call.1} parent=1 // loop_header
      %s13 = sphi 0, %s17
      %p14 = scmp.ge.s32.totalorder %s13, 14
      %s20 = sphi 0, %s32
      %s21 = sphi 0, %s28
      %s22 = sphi 0, %s20
      %s23 = sphi 0, %s21
      %s24 = sphi 0, %s22
      %s25 = sphi 0, %s23
      %s37 = sphi 0, %s39
      %s40 = sphi 0, %s37
      %s41 = sphi 0, %s40
      %s57 = sphi 0, %s41
      %s65 = sphi 0, %s67
      %s68 = sphi 0, %s65
      %s69 = sphi 0, %s68
      %s85 = sphi 0, %s69
    $region4: #{tpu_custom_call.1} parent=1 // loop_header_branch
      %16 = sbr.rel (%p14) target = $region8
    $region5: #{tpu_custom_call.1} parent=1 // loop_body
      %s18 = ssub.s32 %s13, 1
      %s19 = ssub.s32 %s13, 2
      %s26 = sadd.s32 1, %s21
      %p27 = scmp.ge.s32.totalorder %s26, 3
      %s28 = scalar_select %p27, 0, %s26
      %s29 = sadd.s32 1, %s20
      %s30 = scalar_select %p27, %s29, %s20
      %p31 = scmp.ge.s32.totalorder %s30, 4
      %s32 = scalar_select %p31, 0, %s30
      %s33 = ssub.s32 %s21, %s28
      %s34 = ssub.s32 %s20, %s32
      %s35 = sor.u32 %s33, %s34
      %p36 = scmp.eq.s32.totalorder %s35, 0
      %s38 = sadd.s32 %s37, 1
      %s39 = scalar_select %p36, %s37, %s38
      %p42 = pneg %p36
      %p43 = scmp.eq.s32.totalorder %s13, 11
      %p44 = por %p42, %p43
      %p45 = scmp.ne.s32.totalorder %s37, %s40
      %p46 = scmp.eq.s32.totalorder %s13, 0
      %p47 = por %p45, %p46
      %p48 = scmp.ne.s32.totalorder %s37, %s40
      %p49 = scmp.eq.s32.totalorder %s18, 11
      %p50 = por %p48, %p49
      %p51 = scmp.ne.s32.totalorder %s40, %s41
      %p52 = scmp.eq.s32.totalorder %s18, 0
      %p53 = por %p51, %p52
      %p54 = scmp.ne.s32.totalorder %s40, %s41
      %p55 = scmp.eq.s32.totalorder %s19, 11
      %p56 = por %p54, %p55
      %p58 = scmp.ne.s32.totalorder %s41, %s57
      %p59 = scmp.eq.s32.totalorder %s19, 0
      %p60 = por %p58, %p59
      %s61 = ssub.s32 %s21, %s28
      %s62 = ssub.s32 %s20, %s32
      %s63 = sor.u32 %s61, %s62
      %p64 = scmp.eq.s32.totalorder %s63, 0
      %s66 = sadd.s32 %s65, 1
      %s67 = scalar_select %p64, %s65, %s66
      %p70 = pneg %p64
      %p71 = scmp.eq.s32.totalorder %s13, 11
      %p72 = por %p70, %p71
      %p73 = scmp.ne.s32.totalorder %s65, %s68
      %p74 = scmp.eq.s32.totalorder %s13, 0
      %p75 = por %p73, %p74
      %p76 = scmp.ne.s32.totalorder %s65, %s68
      %p77 = scmp.eq.s32.totalorder %s18, 11
      %p78 = por %p76, %p77
      %p79 = scmp.ne.s32.totalorder %s68, %s69
      %p80 = scmp.eq.s32.totalorder %s18, 0
      %p81 = por %p79, %p80
      %p82 = scmp.ne.s32.totalorder %s68, %s69
      %p83 = scmp.eq.s32.totalorder %s19, 11
      %p84 = por %p82, %p83
      %p86 = scmp.ne.s32.totalorder %s69, %s85
      %p87 = scmp.eq.s32.totalorder %s19, 0
      %p88 = por %p86, %p87
      %p89 = scmp.le.s32.totalorder 1, %s13
      %p90 = scmp.lt.s32.totalorder %s13, 13
      %p91 = pnand %p89, %p90
      %p92 = pneg %p91
      // Predicated region
      $region9: #{tpu_custom_call.1} parent=5 // pred_check
        _
      $region10: #{tpu_custom_call.1} parent=5 // pred_check_branch
        %94 = sbr.rel (%p91) target = $region12
      $region11: #{tpu_custom_call.1} parent=5 // pred_region
        %s95 = ssub.s32 %s13, 1
      $region12: #{tpu_custom_call.1} parent=5 // pred_fallthru
        _
      %p96 = scmp.lt.s32.totalorder %s13, 12
      // Predicated region
      $region13: #{tpu_custom_call.1} parent=5 // pred_check
        %p97 = pneg %p96
      $region14: #{tpu_custom_call.1} parent=5 // pred_check_branch
        %99 = sbr.rel (%p97) target = $region16
      $region15: #{tpu_custom_call.1} parent=5 // pred_region
        // Predicated region
        $region17: #{tpu_custom_call.1} parent=15 // pred_check
          %p100 = pneg %p47
        $region18: #{tpu_custom_call.1} parent=15 // pred_check_branch
          %102 = sbr.rel (%p100) target = $region20
        $region19: #{tpu_custom_call.1} parent=15 // pred_region
          %s103 = sand.u32 %s37, 1
          %s104 = scalar_lea.sflag [#allocation3], %s103
          %s105 = sand.u32 %s37, 1
          %s106 = smul.addr %s105, 64
          %s107 = scalar_lea.vmem [#allocation2], %s106
          %s108 = smul.u32 8, %s20
          %s110 = ssub.s32 1024, 1024
          %111 = vsyncadd %s104, %s110
          %s112 = smul.addr %s21, 32
          %s113 = sadd.s32 %s108, %s112
          %s114 = smul.addr %s113, 128
          %s115 = scalar_lea.hbm %s0, %s114
          %s116 = sshll.u32 %s107, 4
          %s117 = int_to_ptr.vmem [resolvable:$true] %s116
          %122 = dma.hbm_to_vmem [thread:$0]  %s115, 1024, %s117, %s104, 128, 128, 8
        $region20: #{tpu_custom_call.1} parent=15 // pred_fallthru
          _
      $region16: #{tpu_custom_call.1} parent=5 // pred_fallthru
        _
      %p123 = scmp.le.s32.totalorder 1, %s13
      %p124 = scmp.lt.s32.totalorder %s13, 13
      %p125 = pnand %p123, %p124
      %p126 = pneg %p125
      // Predicated region
      $region21: #{tpu_custom_call.1} parent=5 // pred_check
        _
      $region22: #{tpu_custom_call.1} parent=5 // pred_check_branch
        %128 = sbr.rel (%p125) target = $region24
      $region23: #{tpu_custom_call.1} parent=5 // pred_region
        %s129 = ssub.s32 %s13, 1
        %s130 = sand.u32 %s40, 1
        %s131 = scalar_lea.sflag [#allocation3], %s130
        %s132 = sand.u32 %s40, 1
        %s133 = smul.addr %s132, 64
        %s134 = scalar_lea.vmem [#allocation2], %s133
        // Predicated region
        $region25: #{tpu_custom_call.1} parent=23 // pred_check
          %p135 = pneg %p53
        $region26: #{tpu_custom_call.1} parent=23 // pred_check_branch
          %137 = sbr.rel (%p135) target = $region28
        $region27: #{tpu_custom_call.1} parent=23 // pred_region
          %138 = dma.done %s131, 1024
        $region28: #{tpu_custom_call.1} parent=23 // pred_fallthru
          _
        %s139 = sand.u32 %s40, 1
        %s140 = scalar_lea.sflag [#allocation3], %s139
        %s141 = sand.u32 %s40, 1
        %s142 = smul.addr %s141, 64
        %s143 = scalar_lea.vmem [#allocation2], %s142
        %p144 = pneg %p53
        %p145 = pneg %p50
        %p146 = pneg %p81
        %p147 = pneg %p78
        %s148 = sand.u32 %s68, 1
        %s149 = scalar_lea.sflag [#allocation4], %s148
        %s150 = sand.u32 %s68, 1
        %s151 = smul.addr %s150, 128
        %s152 = scalar_lea.vmem [#allocation5], %s151
        %s153 = smul.u32 8, %s22
        %s154 = smul.u32 8, %s22
        %v155 = vld [vmem:[%s134] sm:$0xff]
        %v156 = vld [vmem:[%s134 + $0x8] sm:$0xff]
        %v157 = vld [vmem:[%s134 + $0x10] sm:$0xff]
        %v158 = vld [vmem:[%s134 + $0x18] sm:$0xff]
        %v159 = vld [vmem:[%s134 + $0x20] sm:$0xff]
        %v160 = vld [vmem:[%s134 + $0x28] sm:$0xff]
        %v161 = vld [vmem:[%s134 + $0x30] sm:$0xff]
        %v162 = vld [vmem:[%s134 + $0x38] sm:$0xff]
        %171 = vrot.lane.b32.xlu0 %v155, 64
        %v172 = vpop.permute.xlu0 %171
        %173 = vrot.lane.b32.xlu0 %v156, 64
        %v174 = vpop.permute.xlu0 %173
        %175 = vrot.lane.b32.xlu0 %v157, 64
        %v176 = vpop.permute.xlu0 %175
        %177 = vrot.lane.b32.xlu0 %v158, 64
        %v178 = vpop.permute.xlu0 %177
        %179 = vrot.lane.b32.xlu0 %v159, 64
        %v180 = vpop.permute.xlu0 %179
        %181 = vrot.lane.b32.xlu0 %v160, 64
        %v182 = vpop.permute.xlu0 %181
        %183 = vrot.lane.b32.xlu0 %v161, 64
        %v184 = vpop.permute.xlu0 %183
        %185 = vrot.lane.b32.xlu0 %v162, 64
        %v186 = vpop.permute.xlu0 %185
        %vm195 = vcmask 523264
        %v196 = vsel %vm195, 0.0, %v172
        %v197 = vsel %vm195, 0.0, %v174
        %v198 = vsel %vm195, 0.0, %v176
        %v199 = vsel %vm195, 0.0, %v178
        %v200 = vsel %vm195, 0.0, %v180
        %v201 = vsel %vm195, 0.0, %v182
        %v202 = vsel %vm195, 0.0, %v184
        %v203 = vsel %vm195, 0.0, %v186
        %v204 = vsel %vm195, %v172, 0.0
        %v205 = vsel %vm195, %v174, 0.0
        %v206 = vsel %vm195, %v176, 0.0
        %v207 = vsel %vm195, %v178, 0.0
        %v208 = vsel %vm195, %v180, 0.0
        %v209 = vsel %vm195, %v182, 0.0
        %v210 = vsel %vm195, %v184, 0.0
        %v211 = vsel %vm195, %v186, 0.0
        %212 = vst [vmem:[%s152] sm:$0xff] %v196
        %213 = vst [vmem:[%s152 + $0x8] sm:$0xff] %v204
        %214 = vst [vmem:[%s152 + $0x10] sm:$0xff] %v197
        %215 = vst [vmem:[%s152 + $0x18] sm:$0xff] %v205
        %216 = vst [vmem:[%s152 + $0x20] sm:$0xff] %v198
        %217 = vst [vmem:[%s152 + $0x28] sm:$0xff] %v206
        %218 = vst [vmem:[%s152 + $0x30] sm:$0xff] %v199
        %219 = vst [vmem:[%s152 + $0x38] sm:$0xff] %v207
        %220 = vst [vmem:[%s152 + $0x40] sm:$0xff] %v200
        %221 = vst [vmem:[%s152 + $0x48] sm:$0xff] %v208
        %222 = vst [vmem:[%s152 + $0x50] sm:$0xff] %v201
        %223 = vst [vmem:[%s152 + $0x58] sm:$0xff] %v209
        %224 = vst [vmem:[%s152 + $0x60] sm:$0xff] %v202
        %225 = vst [vmem:[%s152 + $0x68] sm:$0xff] %v210
        %226 = vst [vmem:[%s152 + $0x70] sm:$0xff] %v203
        %227 = vst [vmem:[%s152 + $0x78] sm:$0xff] %v211
        %s228 = sand.u32 %s68, 1
        %s229 = scalar_lea.sflag [#allocation4], %s228
        %s230 = sand.u32 %s68, 1
        %s231 = smul.addr %s230, 128
        %s232 = scalar_lea.vmem [#allocation5], %s231
        // Predicated region
        $region29: #{tpu_custom_call.1} parent=23 // pred_check
          %p233 = pneg %p78
        $region30: #{tpu_custom_call.1} parent=23 // pred_check_branch
          %235 = sbr.rel (%p233) target = $region32
        $region31: #{tpu_custom_call.1} parent=23 // pred_region
          %s236 = smul.u32 8, %s22
          %s238 = ssub.s32 2048, 2048
          %239 = vsyncadd %s229, %s238
          %s240 = smul.addr %s236, 2
          %s241 = smul.addr %s23, 64
          %s242 = sadd.s32 %s240, %s241
          %s243 = smul.addr %s242, 128
          %s244 = scalar_lea.hbm %s1, %s243
          %s245 = sshll.u32 %s232, 4
          %s246 = int_to_ptr.vmem [resolvable:$true] %s245
          %251 = dma.vmem_to_hbm [thread:$0]  %s246, 2048, %s244, %s229, 256, 256, 16
        $region32: #{tpu_custom_call.1} parent=23 // pred_fallthru
          _
      $region24: #{tpu_custom_call.1} parent=5 // pred_fallthru
        _
      %p252 = scmp.le.s32.totalorder 2, %s13
      // Predicated region
      $region33: #{tpu_custom_call.1} parent=5 // pred_check
        %p253 = pneg %p252
      $region34: #{tpu_custom_call.1} parent=5 // pred_check_branch
        %255 = sbr.rel (%p253) target = $region36
      $region35: #{tpu_custom_call.1} parent=5 // pred_region
        %s256 = ssub.s32 %s13, 2
        // Predicated region
        $region37: #{tpu_custom_call.1} parent=35 // pred_check
          %p257 = pneg %p84
        $region38: #{tpu_custom_call.1} parent=35 // pred_check_branch
          %259 = sbr.rel (%p257) target = $region40
        $region39: #{tpu_custom_call.1} parent=35 // pred_region
          %s260 = sand.u32 %s69, 1
          %s261 = scalar_lea.sflag [#allocation4], %s260
          %s262 = sand.u32 %s69, 1
          %s263 = smul.addr %s262, 128
          %s264 = scalar_lea.vmem [#allocation5], %s263
          %265 = dma.done %s261, 2048
        $region40: #{tpu_custom_call.1} parent=35 // pred_fallthru
          _
      $region36: #{tpu_custom_call.1} parent=5 // pred_fallthru
        _
    $region6: #{tpu_custom_call.1} parent=1 // loop_footer
      %s17 = sadd.s32 1, %s13
    $region7: #{tpu_custom_call.1} parent=1 // loop_footer_branch
      %12 = sbr.rel target = $region3
    $region8: #{tpu_custom_call.1} parent=1 // loop_exit
      _
    %266 = vsyncpa [#allocation3], 1
    %s267 = scalar_lea.sflag [#allocation3], 1
    %268 = vsyncpa %s267, 1
    %269 = vsyncpa [#allocation4], 1
    %s270 = scalar_lea.sflag [#allocation4], 1
    %271 = vsyncpa %s270, 1

</llo_original>
